<compile_context>
chip_gen: v5e
topology: v5e:2x2
jax: 0.10.0
libtpu: 0.0.40
codegen_flags: <defaults>
</compile_context>

<pallas_src>
import functools

import jax
import jax.numpy as jnp
from jax import lax
from jax.experimental import pallas as pl
from jax.experimental.pallas import tpu as pltpu


def _round_up(x, m):
    return ((x + m - 1) // m) * m


def _pick_s_block(S, cap):
    """Largest multiple of 16 (else 8) <= cap that divides S; else S itself."""
    cap = max(8, min(cap, S))
    for step in (16, 8):
        cands = [m for m in range(step, cap + 1, step) if S % m == 0]
        if cands:
            return cands[-1]
    return S  # no 8-aligned divisor: single full-S block (block dim == array dim is legal)


def _pick_b_block(B, cap):
    """Batch block that divides B (or equals it); returns (b_blk, batch_pad)."""
    cap = max(8, min(cap, 16))   # cap at 16: pooling matmul ~ b_blk^2, v7x VMEM budget
    if B % 8 == 0:
        if cap >= 16 and B % 16 == 0 and B >= 32:
            return 16, 0         # >=2 batch blocks stay available for v7x megacore
        return 8, 0
    if B <= 16:
        return B, 0              # tiny / odd batch: single block == full dim
    # Rare fallback: odd batch > 16 -> pad batch axis so no garbage rows enter
    # the block-diagonal pooling matmul.
    return 8, _round_up(B, 8) - B


def _bert_classifier_kernel(ns_ref, vl_ref, emb_ref, wp_ref, bp_ref, wc_ref,
                            bc_ref, out_ref, acc_ref, *, seq_len):
    """Grid = (batch blocks, seq blocks).  Seq axis is a masked-sum reduction."""
    b = pl.program_id(0)
    s = pl.program_id(1)
    n_s = pl.num_programs(1)
    b_blk, s_blk, hidden = emb_ref.shape

    @pl.when(s == 0)
    def _init():
        acc_ref[...] = jnp.zeros_like(acc_ref)

    # Masked prefix pooling of this (b_blk, s_blk, hidden) tile on the MXU:
    #   acc[r, h] += sum_t mask[r, t] * emb[r, t, h]
    # expressed as W(b_blk x b_blk*s_blk) @ emb2d(b_blk*s_blk x hidden), where
    #   W[r, c] = 1 iff column c belongs to batch row r and its global sequence
    #             position is < valid_length[r]   (== gen_attention_mask).
    # Seq tiles fully past this batch block's longest valid_length are skipped
    # (compute gated here; DMA elided by the clamped index_map).
    @pl.when(s < ns_ref[b])
    def _accumulate():
        flat = b_blk * s_blk
        row = lax.broadcasted_iota(jnp.int32, (b_blk, flat), 0)
        col = lax.broadcasted_iota(jnp.int32, (b_blk, flat), 1)
        t_rel = col - row * s_blk                      # position within row r's chunk
        in_row = (t_rel >= 0) & (t_rel < s_blk)
        pos = s * s_blk + t_rel                        # global sequence position
        keep = in_row & (pos < vl_ref[...])            # vl_ref: (b_blk, 1) int32
        w = jnp.where(keep, 1.0, 0.0).astype(emb_ref.dtype)
        emb2d = emb_ref[...].reshape(flat, hidden)     # layout-preserving when s_blk % 16 == 0
        acc_ref[...] += jnp.dot(w, emb2d, preferred_element_type=jnp.float32)

    # Epilogue: once per batch block — exact mean, pooler dense + tanh, classifier.
    @pl.when(s == n_s - 1)
    def _epilogue():
        denom = jnp.clip(vl_ref[...], 1, seq_len).astype(jnp.float32)     # (b_blk, 1)
        summary = acc_ref[...] / denom                                     # exact mean
        pooled = jnp.tanh(
            jnp.dot(summary.astype(wp_ref.dtype), wp_ref[...],
                    preferred_element_type=jnp.float32) + bp_ref[...])     # (b_blk, H)
        out_ref[...] = (jnp.dot(pooled.astype(wc_ref.dtype), wc_ref[...],
                                preferred_element_type=jnp.float32)
                        + bc_ref[...]).astype(out_ref.dtype)               # (b_blk, C)


def init_params(key, vocab_size, max_seq, hidden_size, num_classes):
    ks = jax.random.split(key, 6)
    scale = 0.02
    return {
        "tok_emb": scale * jax.random.normal(ks[0], (vocab_size, hidden_size), jnp.float32),
        "seg_emb": scale * jax.random.normal(ks[1], (2, hidden_size), jnp.float32),
        "pos_emb": scale * jax.random.normal(ks[2], (max_seq, hidden_size), jnp.float32),
        "pool_w": scale * jax.random.normal(ks[3], (hidden_size, hidden_size), jnp.float32),
        "pool_b": jnp.zeros((1, hidden_size), jnp.float32),
        "clf_w": scale * jax.random.normal(ks[4], (hidden_size, num_classes), jnp.float32),
        "clf_b": jnp.zeros((1, num_classes), jnp.float32),
    }


def bert_classifier_forward(token_ids, valid_length, segment_ids, params,
                            *, b_block=16, s_block_max=512):
    B, S = token_ids.shape
    H = params["tok_emb"].shape[1]
    C = params["clf_w"].shape[1]

    # ---- Glue (plain JAX): embedding lookup, streamed into the kernel as bf16.
    # TODO(synk): the full BERT encoder is an external submodule (`self.bert`);
    # the kernel uses an attention-masked mean of input embeddings as stand-in.
    # TODO(synk): fuse this gather into the kernel (scalar-prefetch token ids +
    # per-row DMA from HBM-resident tables) to avoid writing + re-reading the
    # (B, S, H) activation tensor in HBM — the remaining big HBM-byte lever.
    tok_emb = params["tok_emb"].astype(jnp.bfloat16)
    seg_emb = params["seg_emb"].astype(jnp.bfloat16)
    pos_emb = params["pos_emb"].astype(jnp.bfloat16)
    emb = tok_emb[token_ids] + seg_emb[segment_ids] + pos_emb[None, :S, :]  # (B, S, H) bf16

    # ---- Tile selection: NO padding/copy of the big (B, S, H) tensor.
    s_blk = _pick_s_block(S, s_block_max)          # divides S (or equals S)
    b_blk, pad_b = _pick_b_block(B, b_block)       # divides B (or equals B); rare pad fallback
    if pad_b:
        emb = jnp.pad(emb, ((0, pad_b), (0, 0), (0, 0)))   # rare: odd batch > 16
    Bp = B + pad_b
    nb = Bp // b_blk
    ns = S // s_blk

    vl = jnp.pad(valid_length.astype(jnp.int32).reshape(B, 1),
                 ((0, pad_b), (0, 0)))                                   # (Bp, 1)

    # Per batch-block number of S tiles carrying valid tokens (>=1 so the
    # clamped emb index_map always points at a legal resident block).
    ns_needed = jnp.clip(
        (jnp.max(vl.reshape(nb, b_blk), axis=1) + s_blk - 1) // s_blk,
        1, ns).astype(jnp.int32)                                          # (nb,)

    # Small weights as bf16 (epilogue matmuls accumulate f32 on the MXU).
    wp = params["pool_w"].astype(jnp.bfloat16)                 # (H, H)
    bp = params["pool_b"].astype(jnp.bfloat16).reshape(1, H)   # (1, H)
    wc = params["clf_w"].astype(jnp.bfloat16)                  # (H, C)
    bc = params["clf_b"].astype(jnp.bfloat16).reshape(1, C)    # (1, C)

    kernel = functools.partial(_bert_classifier_kernel, seq_len=S)

    grid_spec = pltpu.PrefetchScalarGridSpec(
        num_scalar_prefetch=1,
        grid=(nb, ns),
        in_specs=[
            pl.BlockSpec((b_blk, 1), lambda b, s, n: (b, 0)),                 # valid_len
            pl.BlockSpec((b_blk, s_blk, H),
                         lambda b, s, n: (b, jnp.minimum(s, n[b] - 1), 0)),   # emb (bf16)
            pl.BlockSpec((H, H), lambda b, s, n: (0, 0)),                     # pool_w (resident)
            pl.BlockSpec((1, H), lambda b, s, n: (0, 0)),                     # pool_b (resident)
            pl.BlockSpec((H, C), lambda b, s, n: (0, 0)),                     # clf_w (resident)
            pl.BlockSpec((1, C), lambda b, s, n: (0, 0)),                     # clf_b (resident)
        ],
        out_specs=pl.BlockSpec((b_blk, C), lambda b, s, n: (b, 0)),
        scratch_shapes=[pltpu.VMEM((b_blk, H), jnp.float32)],
    )

    # VMEM budget: 2x emb tile (double buffer) + 2x small weights + scratch/out,
    # plus headroom; capped at 48 MiB so it also fits v7x's 64 MiB physical VMEM.
    emb_tile_bytes = b_blk * s_blk * H * 2
    weight_bytes = (H * H + H + H * C + C) * 2
    need = (2 * emb_tile_bytes + 2 * weight_bytes
            + b_blk * H * 4 + 2 * (b_blk * C * 4 + b_blk * 4))
    vmem_limit = int(min(max(need + (12 << 20), 32 << 20), 48 << 20))

    flops = 2 * B * S * H + B * (2 * H * H + 2 * H * C)
    bytes_accessed = (B * S * H * 2 + (H * H + H + H * C + C) * 2
                      + Bp * 4 + Bp * C * 4)

    out_p = pl.pallas_call(
        kernel,
        out_shape=jax.ShapeDtypeStruct((Bp, C), jnp.float32),
        grid_spec=grid_spec,
        compiler_params=pltpu.CompilerParams(
            dimension_semantics=("parallel", "arbitrary"),
            vmem_limit_bytes=vmem_limit),
        cost_estimate=pl.CostEstimate(flops=flops,
                                      transcendentals=B * H,
                                      bytes_accessed=bytes_accessed),
    )(ns_needed, vl, emb, wp, bp, wc, bc)

    return out_p[:B, :C]


if __name__ == "__main__":
    B, S, H, C = 2, 8, 32, 44
    VOCAB, MAX_SEQ = 100, 16

    key = jax.random.PRNGKey(0)
    k_params, k_tok, k_seg = jax.random.split(key, 3)

    params = init_params(k_params, VOCAB, MAX_SEQ, H, C)
    token_ids = jax.random.randint(k_tok, (B, S), 0, VOCAB, dtype=jnp.int32)
    segment_ids = jax.random.randint(k_seg, (B, S), 0, 2, dtype=jnp.int32)
    valid_length = jnp.array([5, 8], dtype=jnp.int32)

    logits = bert_classifier_forward(token_ids, valid_length, segment_ids, params)
    jax.block_until_ready(logits)
    assert logits.shape == (B, C) and logits.dtype == jnp.float32
    print("KERNEL_OK")
</pallas_src>

<mosaic_0001>
module attributes {stable_mosaic.version = 11 : i64} {
  func.func @_bert_classifier_kernel(%arg0: i32, %arg1: i32, %arg2: memref<1xi32, #tpu.memory_space<smem>>, %arg3: memref<2x1xi32, #tpu.memory_space<vmem>>, %arg4: memref<2x8x32xbf16, #tpu.memory_space<vmem>>, %arg5: memref<32x32xbf16, #tpu.memory_space<vmem>>, %arg6: memref<1x32xbf16, #tpu.memory_space<vmem>>, %arg7: memref<32x44xbf16, #tpu.memory_space<vmem>>, %arg8: memref<1x44xbf16, #tpu.memory_space<vmem>>, %arg9: memref<2x44xf32, #tpu.memory_space<vmem>>, %arg10: memref<2x32xf32, #tpu.memory_space<vmem>>) attributes {dimension_semantics = [#tpu.dimension_semantics<parallel>, #tpu.dimension_semantics<arbitrary>], iteration_bounds = array<i64: 1, 1>, scalar_prefetch = 1 : i64, scratch_operands = 1 : i64, tpu.core_type = #tpu.core_type<tc>, window_params = [{transform_indices = @transform_0, window_bounds = array<i64: 2, 1>}, {transform_indices = @transform_1, window_bounds = array<i64: 2, 8, 32>}, {pipeline_mode = #tpu.pipeline_mode<synchronous>, transform_indices = @transform_2, window_bounds = array<i64: 32, 32>}, {pipeline_mode = #tpu.pipeline_mode<synchronous>, transform_indices = @transform_3, window_bounds = array<i64: 1, 32>}, {pipeline_mode = #tpu.pipeline_mode<synchronous>, transform_indices = @transform_4, window_bounds = array<i64: 32, 44>}, {pipeline_mode = #tpu.pipeline_mode<synchronous>, transform_indices = @transform_5, window_bounds = array<i64: 1, 44>}, {transform_indices = @transform_6, window_bounds = array<i64: 2, 44>}]} {
    %c0_i32 = arith.constant 0 : i32
    %0 = arith.cmpi eq, %arg1, %c0_i32 : i32
    %1 = arith.extui %0 : i1 to i32
    %c0_i32_0 = arith.constant 0 : i32
    %2 = arith.cmpi ne, %1, %c0_i32_0 : i32
    scf.if %2 {
      %cst = arith.constant 0.000000e+00 : f32
      %11 = vector.broadcast %cst : f32 to vector<2x32xf32>
      %c0 = arith.constant 0 : index
      %c0_4 = arith.constant 0 : index
      %12 = vector.load %arg10[%c0, %c0_4] : memref<2x32xf32, #tpu.memory_space<vmem>>, vector<2x32xf32>
      tpu.vector_store %arg10[%c0, %c0_4], %11 {strides = array<i32>} : memref<2x32xf32, #tpu.memory_space<vmem>>, vector<2x32xf32>,
    } else {
    }
    %3 = arith.index_cast %arg0 : i32 to index
    %4 = memref.load %arg2[%3] : memref<1xi32, #tpu.memory_space<smem>>
    %5 = arith.cmpi slt, %arg1, %4 : i32
    %6 = arith.extui %5 : i1 to i32
    %c0_i32_1 = arith.constant 0 : i32
    %7 = arith.cmpi ne, %6, %c0_i32_1 : i32
    scf.if %7 {
      %11 = tpu.iota {dimensions = array<i32: 0>} : vector<2x16xi32>
      %12 = tpu.iota {dimensions = array<i32: 1>} : vector<2x16xi32>
      %c8_i32 = arith.constant 8 : i32
      %13 = vector.broadcast %c8_i32 : i32 to vector<2x16xi32>
      %14 = arith.muli %11, %13 : vector<2x16xi32>
      %15 = arith.subi %12, %14 : vector<2x16xi32>
      %c0_i32_4 = arith.constant 0 : i32
      %16 = vector.broadcast %c0_i32_4 : i32 to vector<2x16xi32>
      %17 = arith.cmpi sge, %15, %16 : vector<2x16xi32>
      %c8_i32_5 = arith.constant 8 : i32
      %18 = vector.broadcast %c8_i32_5 : i32 to vector<2x16xi32>
      %19 = arith.cmpi slt, %15, %18 : vector<2x16xi32>
      %20 = arith.andi %17, %19 : vector<2x16xi1>
      %c8_i32_6 = arith.constant 8 : i32
      %21 = arith.muli %arg1, %c8_i32_6 : i32
      %22 = vector.broadcast %21 : i32 to vector<2x16xi32>
      %23 = arith.addi %22, %15 : vector<2x16xi32>
      %c0 = arith.constant 0 : index
      %c0_7 = arith.constant 0 : index
      %24 = vector.load %arg3[%c0, %c0_7] : memref<2x1xi32, #tpu.memory_space<vmem>>, vector<2x1xi32>
      %25 = vector.broadcast %24 : vector<2x1xi32> to vector<2x16xi32>
      %26 = arith.cmpi slt, %23, %25 : vector<2x16xi32>
      %27 = arith.andi %20, %26 : vector<2x16xi1>
      %cst = arith.constant 1.000000e+00 : f32
      %cst_8 = arith.constant 0.000000e+00 : f32
      %28 = vector.broadcast %cst : f32 to vector<2x16xf32>
      %29 = vector.broadcast %cst_8 : f32 to vector<2x16xf32>
      %30 = arith.select %27, %28, %29 : vector<2x16xi1>, vector<2x16xf32>
      %31 = arith.truncf %30 : vector<2x16xf32> to vector<2x16xbf16>
      %c0_9 = arith.constant 0 : index
      %c0_10 = arith.constant 0 : index
      %c0_11 = arith.constant 0 : index
      %32 = vector.load %arg4[%c0_9, %c0_10, %c0_11] : memref<2x8x32xbf16, #tpu.memory_space<vmem>>, vector<2x8x32xbf16>
      %33 = vector.shape_cast %32 : vector<2x8x32xbf16> to vector<16x32xbf16>
      %c0_12 = arith.constant 0 : index
      %c0_13 = arith.constant 0 : index
      %34 = vector.load %arg10[%c0_12, %c0_13] : memref<2x32xf32, #tpu.memory_space<vmem>>, vector<2x32xf32>
      %cst_14 = arith.constant dense<0.000000e+00> : vector<2x32xf32>
      %35 = tpu.matmul %31, %33, %cst_14 {dimension_numbers = #tpu.dot_dimension_numbers<[1], [0], [0], [1], [0, 0, 1, 1], [], []>} : vector<2x16xbf16>, vector<16x32xbf16>, vector<2x32xf32> -> vector<2x32xf32>
      %36 = arith.addf %34, %35 : vector<2x32xf32>
      %c0_15 = arith.constant 0 : index
      %c0_16 = arith.constant 0 : index
      %37 = vector.load %arg10[%c0_15, %c0_16] : memref<2x32xf32, #tpu.memory_space<vmem>>, vector<2x32xf32>
      tpu.vector_store %arg10[%c0_15, %c0_16], %36 {strides = array<i32>} : memref<2x32xf32, #tpu.memory_space<vmem>>, vector<2x32xf32>,
    } else {
    }
    %c0_i32_2 = arith.constant 0 : i32
    %8 = arith.cmpi eq, %arg1, %c0_i32_2 : i32
    %9 = arith.extui %8 : i1 to i32
    %c0_i32_3 = arith.constant 0 : i32
    %10 = arith.cmpi ne, %9, %c0_i32_3 : i32
    scf.if %10 {
      %c0 = arith.constant 0 : index
      %c0_4 = arith.constant 0 : index
      %11 = vector.load %arg3[%c0, %c0_4] : memref<2x1xi32, #tpu.memory_space<vmem>>, vector<2x1xi32>
      %c1_i32 = arith.constant 1 : i32
      %c8_i32 = arith.constant 8 : i32
      %12 = vector.broadcast %c1_i32 : i32 to vector<2x1xi32>
      %13 = arith.maxsi %12, %11 : vector<2x1xi32>
      %14 = vector.broadcast %c8_i32 : i32 to vector<2x1xi32>
      %15 = arith.minsi %14, %13 : vector<2x1xi32>
      %16 = arith.sitofp %15 : vector<2x1xi32> to vector<2x1xf32>
      %c0_5 = arith.constant 0 : index
      %c0_6 = arith.constant 0 : index
      %17 = vector.load %arg10[%c0_5, %c0_6] : memref<2x32xf32, #tpu.memory_space<vmem>>, vector<2x32xf32>
      %18 = vector.broadcast %16 : vector<2x1xf32> to vector<2x32xf32>
      %19 = arith.divf %17, %18 : vector<2x32xf32>
      %20 = arith.truncf %19 : vector<2x32xf32> to vector<2x32xbf16>
      %c0_7 = arith.constant 0 : index
      %c0_8 = arith.constant 0 : index
      %21 = vector.load %arg5[%c0_7, %c0_8] : memref<32x32xbf16, #tpu.memory_space<vmem>>, vector<32x32xbf16>
      %cst = arith.constant dense<0.000000e+00> : vector<2x32xf32>
      %22 = tpu.matmul %20, %21, %cst {dimension_numbers = #tpu.dot_dimension_numbers<[1], [0], [0], [1], [0, 0, 1, 1], [], []>} : vector<2x32xbf16>, vector<32x32xbf16>, vector<2x32xf32> -> vector<2x32xf32>
      %c0_9 = arith.constant 0 : index
      %c0_10 = arith.constant 0 : index
      %23 = vector.load %arg6[%c0_9, %c0_10] : memref<1x32xbf16, #tpu.memory_space<vmem>>, vector<1x32xbf16>
      %24 = arith.extf %23 : vector<1x32xbf16> to vector<1x32xf32>
      %25 = vector.broadcast %24 : vector<1x32xf32> to vector<2x32xf32>
      %26 = arith.addf %22, %25 : vector<2x32xf32>
      %27 = math.tanh %26 : vector<2x32xf32>
      %28 = arith.truncf %27 : vector<2x32xf32> to vector<2x32xbf16>
      %c0_11 = arith.constant 0 : index
      %c0_12 = arith.constant 0 : index
      %29 = vector.load %arg7[%c0_11, %c0_12] : memref<32x44xbf16, #tpu.memory_space<vmem>>, vector<32x44xbf16>
      %cst_13 = arith.constant dense<0.000000e+00> : vector<2x44xf32>
      %30 = tpu.matmul %28, %29, %cst_13 {dimension_numbers = #tpu.dot_dimension_numbers<[1], [0], [0], [1], [0, 0, 1, 1], [], []>} : vector<2x32xbf16>, vector<32x44xbf16>, vector<2x44xf32> -> vector<2x44xf32>
      %c0_14 = arith.constant 0 : index
      %c0_15 = arith.constant 0 : index
      %31 = vector.load %arg8[%c0_14, %c0_15] : memref<1x44xbf16, #tpu.memory_space<vmem>>, vector<1x44xbf16>
      %32 = arith.extf %31 : vector<1x44xbf16> to vector<1x44xf32>
      %33 = vector.broadcast %32 : vector<1x44xf32> to vector<2x44xf32>
      %34 = arith.addf %30, %33 : vector<2x44xf32>
      %c0_16 = arith.constant 0 : index
      %c0_17 = arith.constant 0 : index
      %35 = vector.load %arg9[%c0_16, %c0_17] : memref<2x44xf32, #tpu.memory_space<vmem>>, vector<2x44xf32>
      tpu.vector_store %arg9[%c0_16, %c0_17], %34 {strides = array<i32>} : memref<2x44xf32, #tpu.memory_space<vmem>>, vector<2x44xf32>,
    } else {
    }
    return
  }
  func.func @transform_0(%arg0: i32, %arg1: i32, %arg2: memref<1xi32, #tpu.memory_space<smem>>) -> (i32, i32) {
    %c0_i32 = arith.constant 0 : i32
    %c0_i32_0 = arith.constant 0 : i32
    return %arg0, %c0_i32 : i32, i32
  }
  func.func @transform_1(%arg0: i32, %arg1: i32, %arg2: memref<1xi32, #tpu.memory_space<smem>>) -> (i32, i32, i32) {
    %0 = arith.index_cast %arg0 : i32 to index
    %1 = memref.load %arg2[%0] : memref<1xi32, #tpu.memory_space<smem>>
    %c1_i32 = arith.constant 1 : i32
    %2 = arith.subi %1, %c1_i32 : i32
    %3 = arith.minsi %arg1, %2 : i32
    %c0_i32 = arith.constant 0 : i32
    %c0_i32_0 = arith.constant 0 : i32
    return %arg0, %3, %c0_i32 : i32, i32, i32
  }
  func.func @transform_2(%arg0: i32, %arg1: i32, %arg2: memref<1xi32, #tpu.memory_space<smem>>) -> (i32, i32) {
    %c0_i32 = arith.constant 0 : i32
    %c0_i32_0 = arith.constant 0 : i32
    %c0_i32_1 = arith.constant 0 : i32
    return %c0_i32, %c0_i32_0 : i32, i32
  }
  func.func @transform_3(%arg0: i32, %arg1: i32, %arg2: memref<1xi32, #tpu.memory_space<smem>>) -> (i32, i32) {
    %c0_i32 = arith.constant 0 : i32
    %c0_i32_0 = arith.constant 0 : i32
    %c0_i32_1 = arith.constant 0 : i32
    return %c0_i32, %c0_i32_0 : i32, i32
  }
  func.func @transform_4(%arg0: i32, %arg1: i32, %arg2: memref<1xi32, #tpu.memory_space<smem>>) -> (i32, i32) {
    %c0_i32 = arith.constant 0 : i32
    %c0_i32_0 = arith.constant 0 : i32
    %c0_i32_1 = arith.constant 0 : i32
    return %c0_i32, %c0_i32_0 : i32, i32
  }
  func.func @transform_5(%arg0: i32, %arg1: i32, %arg2: memref<1xi32, #tpu.memory_space<smem>>) -> (i32, i32) {
    %c0_i32 = arith.constant 0 : i32
    %c0_i32_0 = arith.constant 0 : i32
    %c0_i32_1 = arith.constant 0 : i32
    return %c0_i32, %c0_i32_0 : i32, i32
  }
  func.func @transform_6(%arg0: i32, %arg1: i32, %arg2: memref<1xi32, #tpu.memory_space<smem>>) -> (i32, i32) {
    %c0_i32 = arith.constant 0 : i32
    %c0_i32_0 = arith.constant 0 : i32
    return %arg0, %c0_i32 : i32, i32
  }
}

</mosaic_0001>

<llo_original>
// kernel: tpu_custom_call.1
$region0: #{tpu_custom_call.1}
  #allocation0 [shape = 'u32[]', space=smem, size = 0x4, offset = 0x4, fixed_abs, tag = 'smem constant byte address 0x4 - core index']
  #allocation1 [shape = 'u32[72,128]{1,0:T(1,128)}', space=vmem, size = 0x9000, scoped, tag = 'internal scratch']
  #allocation2 [shape = 'f32[2,32]{1,0:T(2,128)}', space=vmem, size = 0x400, scoped, tag = 'scratch operand']
  #allocation3 [shape = 's32[1]{0}', space=sflag, size = 0x4, scoped, tag = 'scoped memory for tpu_custom_call.1']
  #allocation4 [shape = 's32[1]{0:T(128)S(6)}', space=smem, size = 0x200, scoped, tag = 'prefetched SMEM operand 0']
  %s0 = inlined_call_operand.<no memory space> [shape: s32[1], index: 0, kind: input, shape index: {}]
  %s1 = inlined_call_operand.vmem [shape: s32[2,1], index: 1, kind: input, shape index: {}]
  %s2 = inlined_call_operand.hbm [shape: bf16[2,8,32], index: 2, kind: input, shape index: {}]
  %s3 = inlined_call_operand.hbm [shape: bf16[32,32], index: 3, kind: input, shape index: {}]
  %s4 = inlined_call_operand.vmem [shape: bf16[1,32], index: 4, kind: input, shape index: {}]
  %s5 = inlined_call_operand.hbm [shape: bf16[32,44], index: 5, kind: input, shape index: {}]
  %s6 = inlined_call_operand.vmem [shape: bf16[1,44], index: 6, kind: input, shape index: {}]
  %s7 = inlined_call_operand.hbm [shape: f32[2,44], index: 7, kind: output, shape index: {}]
  %s8 = sld [smem:[#allocation0]]
  $region58: #{tpu_custom_call.1} parent=0
    _
  %s10 = ssub.s32 1, %s8
  %s11 = scalar_select 0, %s10, %s8
  %12 = sst [smem:[#allocation4]] %s0
  $region1: #{tpu_custom_call.1} parent=0
    #allocation5 [shape = 'u8[4096]{0}', space=vmem, size = 0x1000, scoped, tag = 'input window, operand 2, single buffered']
    #allocation6 [shape = 's32[1]{0}', space=sflag, size = 0x4, scoped, tag = 'scoped memory for tpu_custom_call.1']
    #allocation7 [shape = 's32[1]{0}', space=sflag, size = 0x4, scoped, tag = 'scoped memory for tpu_custom_call.1']
    #allocation8 [shape = 'u8[8192]{0}', space=vmem, size = 0x2000, scoped, tag = 'input window, operand 3, single buffered']
    #allocation9 [shape = 's32[1]{0}', space=sflag, size = 0x4, scoped, tag = 'scoped memory for tpu_custom_call.1']
    #allocation10 [shape = 'u8[8192]{0}', space=vmem, size = 0x2000, scoped, tag = 'input window, operand 5, single buffered']
    #allocation11 [shape = 'u8[1024]{0}', space=vmem, size = 0x400, scoped, tag = 'output window, operand 0, single buffered']
    %13 = vsyncpa [#allocation6], 0
    %14 = vsyncpa [#allocation9], 0
    %15 = vsyncpa [#allocation7], 0
    // Predicated region
    $region2: #{tpu_custom_call.1} parent=1 // pred_check
      _
    $region3: #{tpu_custom_call.1} parent=1 // pred_check_branch
      %17 = sbr.rel (0) target = $region5
    $region4: #{tpu_custom_call.1} parent=1 // pred_region
      _
    $region5: #{tpu_custom_call.1} parent=1 // pred_fallthru
      _
    // Predicated region
    $region6: #{tpu_custom_call.1} parent=1 // pred_check
      _
    $region7: #{tpu_custom_call.1} parent=1 // pred_check_branch
      %19 = sbr.rel (0) target = $region9
    $region8: #{tpu_custom_call.1} parent=1 // pred_region
      %s20 = sld [smem:[#allocation4]]
      %s21 = ssub.s32 %s20, 1
      %p22 = scmp.lt.s32.totalorder 0, %s21
      %s23 = scalar_select %p22, 0, %s21
      %25 = vsyncadd [#allocation6], 0
      %s26 = smul.addr %s23, 4
      %s27 = scalar_lea.hbm %s2, %s26
      %s28 = sshll.u32 %s27, 4
      %s29 = int_to_ptr.hbm [resolvable:$true] %s28
      %s30 = sshll.u32 [#allocation5], 4
      %s31 = int_to_ptr.vmem [resolvable:$true] %s30
      %36 = dma.hbm_to_vmem [thread:$0]  %s29, 128, %s31, [#allocation6], 64, 64, 4
    $region9: #{tpu_custom_call.1} parent=1 // pred_fallthru
      _
    // Predicated region
    $region10: #{tpu_custom_call.1} parent=1 // pred_check
      _
    $region11: #{tpu_custom_call.1} parent=1 // pred_check_branch
      %38 = sbr.rel (0) target = $region13
    $region12: #{tpu_custom_call.1} parent=1 // pred_region
      %40 = vsyncadd [#allocation9], 0
      %s41 = sshll.u32 %s3, 4
      %s42 = int_to_ptr.hbm [resolvable:$true] %s41
      %s43 = sshll.u32 [#allocation8], 4
      %s44 = int_to_ptr.vmem [resolvable:$true] %s43
      %49 = dma.hbm_to_vmem [thread:$0]  %s42, 256, %s44, [#allocation9], 64, 64, 4
    $region13: #{tpu_custom_call.1} parent=1 // pred_fallthru
      _
    // Predicated region
    $region14: #{tpu_custom_call.1} parent=1 // pred_check
      _
    $region15: #{tpu_custom_call.1} parent=1 // pred_check_branch
      %51 = sbr.rel (0) target = $region17
    $region16: #{tpu_custom_call.1} parent=1 // pred_region
      _
    $region17: #{tpu_custom_call.1} parent=1 // pred_fallthru
      _
    // Predicated region
    $region18: #{tpu_custom_call.1} parent=1 // pred_check
      _
    $region19: #{tpu_custom_call.1} parent=1 // pred_check_branch
      %53 = sbr.rel (0) target = $region21
    $region20: #{tpu_custom_call.1} parent=1 // pred_region
      %55 = vsyncadd [#allocation9], 0
      %s56 = sshll.u32 %s5, 4
      %s57 = int_to_ptr.hbm [resolvable:$true] %s56
      %s58 = sshll.u32 [#allocation10], 4
      %s59 = int_to_ptr.vmem [resolvable:$true] %s58
      %64 = dma.hbm_to_vmem [thread:$0]  %s57, 256, %s59, [#allocation9], 64, 64, 4
    $region21: #{tpu_custom_call.1} parent=1 // pred_fallthru
      _
    // Predicated region
    $region22: #{tpu_custom_call.1} parent=1 // pred_check
      _
    $region23: #{tpu_custom_call.1} parent=1 // pred_check_branch
      %66 = sbr.rel (0) target = $region25
    $region24: #{tpu_custom_call.1} parent=1 // pred_region
      _
    $region25: #{tpu_custom_call.1} parent=1 // pred_fallthru
      _
    // Predicated region
    $region26: #{tpu_custom_call.1} parent=1 // pred_check
      _
    $region27: #{tpu_custom_call.1} parent=1 // pred_check_branch
      %68 = sbr.rel (0) target = $region29
    $region28: #{tpu_custom_call.1} parent=1 // pred_region
      %70 = dma.done [#allocation6], 128
    $region29: #{tpu_custom_call.1} parent=1 // pred_fallthru
      _
    // Predicated region
    $region30: #{tpu_custom_call.1} parent=1 // pred_check
      _
    $region31: #{tpu_custom_call.1} parent=1 // pred_check_branch
      %72 = sbr.rel (0) target = $region33
    $region32: #{tpu_custom_call.1} parent=1 // pred_region
      %74 = dma.done [#allocation9], 256
    $region33: #{tpu_custom_call.1} parent=1 // pred_fallthru
      _
    // Predicated region
    $region34: #{tpu_custom_call.1} parent=1 // pred_check
      _
    $region35: #{tpu_custom_call.1} parent=1 // pred_check_branch
      %76 = sbr.rel (0) target = $region37
    $region36: #{tpu_custom_call.1} parent=1 // pred_region
      %78 = dma.done [#allocation9], 256
    $region37: #{tpu_custom_call.1} parent=1 // pred_fallthru
      _
    %s79 = sld [smem:[#allocation4]]
    %s80 = ssub.s32 %s79, 1
    %p81 = scmp.lt.s32.totalorder 0, %s80
    %s82 = scalar_select %p81, 0, %s80
    %p84 = scmp.eq.s32.totalorder 0, 0
    // Predicated region
    $region38: #{tpu_custom_call.1} parent=1 // pred_check
      %p85 = pneg %p84
    $region39: #{tpu_custom_call.1} parent=1 // pred_check_branch
      %87 = sbr.rel (%p85) target = $region41
    $region40: #{tpu_custom_call.1} parent=1 // pred_region
      %vm88 = vcmask 254976
      %89 = vst.msk [vmem:[#allocation2] sm:$0x3] %vm88, 0.0
    $region41: #{tpu_custom_call.1} parent=1 // pred_fallthru
      _
    %s90 = sld [smem:[#allocation4]]
    %p91 = scmp.lt.s32.totalorder 0, %s90
    // Predicated region
    $region42: #{tpu_custom_call.1} parent=1 // pred_check
      %p92 = pneg %p91
    $region43: #{tpu_custom_call.1} parent=1 // pred_check_branch
      %94 = sbr.rel (%p92) target = $region45
    $region44: #{tpu_custom_call.1} parent=1 // pred_region
      %v95 = vlaneseq
      %v96 = vshrl.u32 %v95, 7
      %v97 = vlaneseq
      %v98 = vand.u32 %v97, 127
      %v99 = vmul.u32 %v96, 8
      %v100 = vsub.s32 %v98, %v99
      %vm101 = vcmp.ge.s32.totalorder %v100, 0
      %vm102 = vcmp.lt.s32.totalorder %v100, 8
      %vm103 = vmand %vm101, %vm102
      %s104 = smul.u32 0, 8
      %v105 = vstv %s104
      %v106 = vadd.s32 %v105, %v100
      %v107 = vld [vmem:[%s1] sm:$0x3]
      %108 = vset.pattern.permute.xlu0 0
      %109 = vperm.xlu0 %108, %v107
      %v110 = vpop.permute.xlu0 %109
      %vm111 = vcmp.lt.s32.totalorder %v106, %v110
      %vm112 = vmand %vm103, %vm111
      %v113 = vsel %vm112, 1.0, 0.0
      %v114 = vpack.c.bf16 %v113, %v113
      %v115 = vld [vmem:[#allocation5] sm:$0xf]
      %v116 = vld [vmem:[#allocation5 + $0x4] sm:$0xf]
      %v117 = vld [vmem:[#allocation2] sm:$0x3]
      %v120 = vunpack.c.l.b16 %v115
      %v121 = vunpack.c.l.b16 %v116
      %v122 = vpack.c.b16 %v121, %v120
      %vm124 = vcmask 130048
      %v126 = vsel %vm124, %v114, 0
      %128 = vmatpush.bf16.msra.mxu0 0
      %129 = vmatpush.bf16.msra.mxu0 0
      %130 = vmatpush.bf16.msra.mxu0 0
      %131 = vmatpush.bf16.msra.mxu0 0
      %132 = vmatpush.bf16.msra.mxu0 0
      %133 = vmatpush.bf16.msra.mxu0 0
      %134 = vmatpush.bf16.msra.mxu0 0
      %135 = vmatpush.bf16.msra.mxu0 %v122
      %136 = vmatmul.bf16.gmra.mxu0 %v126
      %v137 = vpop.f32.mrf.mxu0
      %v138 = vadd.f32 0.0, %v137
      %v139 = vpop.f32.mrf.mxu0
      %140 = vdwg.mxu0
      %v141 = vadd.f32 %v117, %v138
      %vm142 = vcmask 254976
      %143 = vst.msk [vmem:[#allocation2] sm:$0x3] %vm142, %v141
    $region45: #{tpu_custom_call.1} parent=1 // pred_fallthru
      _
    // Predicated region
    $region46: #{tpu_custom_call.1} parent=1 // pred_check
      %p144 = pneg %p84
    $region47: #{tpu_custom_call.1} parent=1 // pred_check_branch
      %146 = sbr.rel (%p144) target = $region49
    $region48: #{tpu_custom_call.1} parent=1 // pred_region
      %v147 = vld [vmem:[%s1] sm:$0x3]
      %vm148 = vcmp.gt.s32.totalorder %v147, 1
      %v149 = vsel %vm148, %v147, 1
      %vm150 = vcmp.lt.s32.totalorder %v149, 8
      %v151 = vsel %vm150, %v149, 8
      %v152 = vcvt.s32.f32 %v151
      %v153 = vld [vmem:[#allocation2] sm:$0x3]
      %155 = vset.pattern.permute.xlu0 0
      %156 = vperm.xlu0 %155, %v152
      %v157 = vpop.permute.xlu0 %156
      %v159 = vrcp.pop %v157
      %v160 = vmul.f32 %v157, %v159
      %v161 = vsub.f32 1.0, %v160
      %v162 = vmul.f32 %v159, %v161
      %v163 = vadd.f32 %v159, %v162
      %vm164 = vweird.f32 %v157
      %vm165 = vweird.f32 %v159
      %vm166 = vmor %vm164, %vm165
      %v167 = vsel %vm166, %v159, %v163
      %v168 = vand.u32 2147483647, %v157
      %vm169 = vcmp.eq.f32.partialorder %v168, 8.507059e+37
      %v170 = vand.u32 %v157, 2147483648
      %v171 = vor.u32 1.1754944e-38, %v170
      %v172 = vsel %vm169, %v171, %v167
      %v173 = vmul.f32 %v153, %v172
      %v174 = vpack.c.bf16 %v173, %v173
      %v175 = vld [vmem:[#allocation8] sm:$0xf]
      %v176 = vld [vmem:[#allocation8 + $0x4] sm:$0xf]
      %v177 = vld [vmem:[#allocation8 + $0x8] sm:$0xf]
      %v178 = vld [vmem:[#allocation8 + $0xc] sm:$0xf]
      %v179 = vld [vmem:[%s4] sm:$0x1]
      %v180 = vunpack.c.l.bf16 %v179
      %v181 = vperm.slane %v180, 0
      %v186 = vunpack.c.l.b16 %v175
      %v187 = vunpack.c.l.b16 %v176
      %v188 = vunpack.c.l.b16 %v177
      %v189 = vunpack.c.l.b16 %v178
      %v190 = vpack.c.b16 %v187, %v186
      %v191 = vpack.c.b16 %v189, %v188
      %vm194 = vcmask 261120
      %v196 = vsel %vm194, %v174, 0
      %198 = vmatpush.bf16.msra.mxu0 0
      %199 = vmatpush.bf16.msra.mxu0 0
      %200 = vmatpush.bf16.msra.mxu0 0
      %201 = vmatpush.bf16.msra.mxu0 0
      %202 = vmatpush.bf16.msra.mxu0 0
      %203 = vmatpush.bf16.msra.mxu0 0
      %204 = vmatpush.bf16.msra.mxu0 %v191
      %205 = vmatpush.bf16.msra.mxu0 %v190
      %206 = vmatmul.bf16.gmra.mxu0 %v196
      %v207 = vpop.f32.mrf.mxu0
      %v208 = vadd.f32 %v181, %v207
      %v209 = vpop.f32.mrf.mxu0
      %210 = vdwg.mxu0
      %v211 = vtanh.pop %v208
      %v212 = vpack.c.bf16 %v211, %v211
      %v213 = vld [vmem:[#allocation10] sm:$0xf]
      %v214 = vld [vmem:[#allocation10 + $0x4] sm:$0xf]
      %v215 = vld [vmem:[#allocation10 + $0x8] sm:$0xf]
      %v216 = vld [vmem:[#allocation10 + $0xc] sm:$0xf]
      %v217 = vld [vmem:[%s6] sm:$0x1]
      %v218 = vunpack.c.l.bf16 %v217
      %v219 = vperm.slane %v218, 0
      %v224 = vunpack.c.l.b16 %v213
      %v225 = vunpack.c.l.b16 %v214
      %v226 = vunpack.c.l.b16 %v215
      %v227 = vunpack.c.l.b16 %v216
      %v228 = vpack.c.b16 %v225, %v224
      %v229 = vpack.c.b16 %v227, %v226
      %v233 = vsel %vm194, %v212, 0
      %235 = vmatpush.bf16.msra.mxu0 0
      %236 = vmatpush.bf16.msra.mxu0 0
      %237 = vmatpush.bf16.msra.mxu0 0
      %238 = vmatpush.bf16.msra.mxu0 0
      %239 = vmatpush.bf16.msra.mxu0 0
      %240 = vmatpush.bf16.msra.mxu0 0
      %241 = vmatpush.bf16.msra.mxu0 %v229
      %242 = vmatpush.bf16.msra.mxu0 %v228
      %243 = vmatmul.bf16.gmra.mxu0 %v233
      %v244 = vpop.f32.mrf.mxu0
      %v245 = vadd.f32 %v219, %v244
      %v246 = vpop.f32.mrf.mxu0
      %247 = vdwg.mxu0
      %vm248 = vcmask 353280
      %249 = vst.msk [vmem:[#allocation11] sm:$0x3] %vm248, %v245
    $region49: #{tpu_custom_call.1} parent=1 // pred_fallthru
      _
    // Predicated region
    $region50: #{tpu_custom_call.1} parent=1 // pred_check
      _
    $region51: #{tpu_custom_call.1} parent=1 // pred_check_branch
      %251 = sbr.rel (0) target = $region53
    $region52: #{tpu_custom_call.1} parent=1 // pred_region
      %253 = vsyncadd [#allocation7], 0
      %s255 = sshll.u32 [#allocation11], 4
      %s256 = int_to_ptr.vmem [resolvable:$true] %s255
      %s257 = sshll.u32 %s7, 4
      %s258 = int_to_ptr.hbm [resolvable:$true] %s257
      %260 = dma.vmem_to_hbm [thread:$0]  %s256, 32, %s258, [#allocation7]
    $region53: #{tpu_custom_call.1} parent=1 // pred_fallthru
      _
    // Predicated region
    $region54: #{tpu_custom_call.1} parent=1 // pred_check
      _
    $region55: #{tpu_custom_call.1} parent=1 // pred_check_branch
      %262 = sbr.rel (0) target = $region57
    $region56: #{tpu_custom_call.1} parent=1 // pred_region
      %264 = dma.done [#allocation7], 32
    $region57: #{tpu_custom_call.1} parent=1 // pred_fallthru
      _
    %265 = vsyncpa [#allocation6], 1
    %266 = vsyncpa [#allocation9], 1
    %267 = vsyncpa [#allocation7], 1

</llo_original>
